<compile_context>
chip_gen: v5e
topology: v5e:2x2
jax: 0.10.0
libtpu: 0.0.40
codegen_flags: <defaults>
</compile_context>

<pallas_src>
import math
import numpy as np
import jax
import jax.numpy as jnp
from jax.experimental import pallas as pl
from jax.experimental.pallas import tpu as pltpu

# ---- module constants referenced by the PyTorch __init__ (synthetic values) ----
SAMPLING_RATE = 128          # Hz
MELS_WINDOW_SIZE = 0.5       # seconds  -> win_length = 64 samples
MELS_WINDOW_STRIDE = 0.25    # seconds  -> hop        = 32 samples
MELS = 8
MELS_MIN_FREQ = 0.0
MELS_MAX_FREQ = 64.0         # Nyquist for 128 Hz


# ---------------- mel filterbank (torchaudio melscale_fbanks, htk, norm=None) ----------------
def _hz_to_mel(f):
    return 2595.0 * np.log10(1.0 + f / 700.0)


def _mel_to_hz(m):
    return 700.0 * (10.0 ** (m / 2595.0) - 1.0)


def melscale_fbanks(n_freqs, f_min, f_max, n_mels, sample_rate):
    all_freqs = np.linspace(0.0, sample_rate // 2, n_freqs)
    m_pts = np.linspace(_hz_to_mel(f_min), _hz_to_mel(f_max), n_mels + 2)
    f_pts = _mel_to_hz(m_pts)
    f_diff = f_pts[1:] - f_pts[:-1]                       # (n_mels + 1,)
    slopes = f_pts[None, :] - all_freqs[:, None]          # (n_freqs, n_mels + 2)
    down = -slopes[:, :-2] / f_diff[:-1]
    up = slopes[:, 2:] / f_diff[1:]
    fb = np.maximum(0.0, np.minimum(down, up))
    return fb.astype(np.float32)                          # (n_freqs, n_mels)


# ---------------- Pallas kernel: in-kernel framing + STFT magnitude + mel projection ----------------
def _mel_kernel(chunks_ref, basis_ref, fb_ref, out_ref, look_ref):
    # chunks_ref: (row_tile, hop)   f32  -- hop-sized signal chunks, whole signals per tile
    # basis_ref:  (win, 2*f_pad)    bf16 -- trimmed windowed DFT basis, [cos | sin] on lanes
    # fb_ref:     (f_pad, n_mels)   f32  -- mel filterbank (freq axis lane-padded)
    # out_ref:    (row_tile, n_mels)f32  -- mel vector of the frame starting at each chunk
    # look_ref:   (row_tile+tail, hop) f32 scratch for the shifted (lookahead) views
    row_tile, hop = chunks_ref.shape
    win = basis_ref.shape[0]
    r = win // hop                                        # chunks per frame (== 2 here)
    f_pad = fb_ref.shape[0]
    tail = look_ref.shape[0] - row_tile

    # Stage this tile's chunks (plus a zero tail) in VMEM so the j-row-lookahead
    # views below are plain ref slices -- the frame matrix never touches HBM. [opt 2]
    look_ref[pl.ds(0, row_tile), :] = chunks_ref[...]
    look_ref[pl.ds(row_tile, tail), :] = jnp.zeros((tail, hop), jnp.float32)

    # STFT: frame f = chunks f..f+r-1  =>  frames @ basis = sum_j shift_j(chunks) @ basis_j
    cs = None
    for j in range(r):                                    # static unroll (r == 2)
        cj = look_ref[pl.ds(j, row_tile), :].astype(jnp.bfloat16)      # bf16 MXU LHS [opt 7]
        bj = basis_ref[pl.ds(j * hop, hop), :]                          # bf16 MXU RHS
        d = jnp.dot(cj, bj, preferred_element_type=jnp.float32)
        cs = d if cs is None else cs + d                  # (row_tile, 2*f_pad) f32

    re = cs[:, :f_pad]
    im = cs[:, f_pad:]
    mag = jnp.sqrt(re * re + im * im)                     # power=1, window-normalized (f32)
    # Narrow n_mels-wide store: 16x less writeback than a 128-lane padded block. [opt 3]
    out_ref[...] = jnp.dot(mag, fb_ref[...], preferred_element_type=jnp.float32)


class MelSpectrogram:
    def __init__(self, sampling_rate=SAMPLING_RATE, window_size=MELS_WINDOW_SIZE,
                 window_stride=MELS_WINDOW_STRIDE, mels=MELS,
                 min_freq=MELS_MIN_FREQ, max_freq=MELS_MAX_FREQ, get_decibels=False):
        self.sampling_rate = sampling_rate
        self.min_freq = min_freq
        self.max_freq = max_freq
        self.mels = mels
        self.window_size = math.floor(window_size * sampling_rate)      # win_length (samples)
        self.window_stride = math.floor(window_stride * sampling_rate)  # hop_length (samples)
        self.get_decibels = get_decibels

        self.n_fft = max(128, self.window_size)
        self.n_freqs = self.n_fft // 2 + 1
        self.f_pad = 128 * ((self.n_freqs + 127) // 128)   # lane-pad the frequency axis

        win, hop, n_fft = self.window_size, self.window_stride, self.n_fft
        # The in-kernel framing scheme needs a whole number of hops per window
        # (true for the module constants: 64 == 2 * 32).
        assert win % hop == 0, "TODO(synk): non-integer win/hop ratio needs a gather path"
        self.r = win // hop                                # chunks per frame

        # periodic Hann window of win_length; torchaudio 'window' normalization
        n = np.arange(win)
        hann = 0.5 * (1.0 - np.cos(2.0 * np.pi * n / win))
        norm = np.sqrt(np.sum(hann ** 2))                  # normalized=True

        # Trimmed, windowed real-DFT basis: only the win rows where the
        # center-padded window is non-zero (the other n_fft-win rows are exactly
        # zero and contribute nothing).  'pos' keeps each sample's true position
        # inside the length-n_fft frame, so re/im match torch.stft exactly.   [opt 1]
        pos = (np.arange(win) + (n_fft - win) // 2)[:, None]
        kk = np.arange(self.n_freqs)[None, :]
        ang = 2.0 * np.pi * pos * kk / n_fft
        cos_b = (hann[:, None] * np.cos(ang)) / norm
        sin_b = -(hann[:, None] * np.sin(ang)) / norm
        basis = np.zeros((win, 2 * self.f_pad), dtype=np.float32)
        basis[:, :self.n_freqs] = cos_b
        basis[:, self.f_pad:self.f_pad + self.n_freqs] = sin_b
        self.basis = jnp.asarray(basis, dtype=jnp.bfloat16)   # bf16 MXU operand [opt 7]

        fb = melscale_fbanks(self.n_freqs, self.min_freq, self.max_freq,
                             self.mels, self.sampling_rate)
        fb_pad = np.zeros((self.f_pad, self.mels), dtype=np.float32)
        fb_pad[:self.n_freqs, :] = fb
        self.fb = jnp.asarray(fb_pad)                      # (f_pad, n_mels) f32

    # ---- pallas_call builder (single_buffer_consts toggles pl.Buffered(1)) ----
    def _mel_pallas(self, chunks_flat, row_tile, rows_pad, n_tiles, single_buffer_consts):
        hop = self.window_stride
        tail = 8 * max(1, (self.r - 1 + 7) // 8)          # sublane-aligned lookahead tail

        def const_spec(shape):
            if single_buffer_consts:
                # grid-invariant operand -> one buffer is enough              [opt 8]
                return pl.BlockSpec(shape, lambda i: (0, 0),
                                    pipeline_mode=pl.Buffered(1))
            return pl.BlockSpec(shape, lambda i: (0, 0))

        return pl.pallas_call(
            _mel_kernel,
            out_shape=jax.ShapeDtypeStruct((rows_pad, self.mels), jnp.float32),
            grid=(n_tiles,),
            in_specs=[
                pl.BlockSpec((row_tile, hop), lambda i: (i, 0)),
                const_spec((self.window_size, 2 * self.f_pad)),
                const_spec((self.f_pad, self.mels)),
            ],
            out_specs=pl.BlockSpec((row_tile, self.mels), lambda i: (i, 0)),
            scratch_shapes=[pltpu.VMEM((row_tile + tail, hop), jnp.float32)],
            compiler_params=pltpu.CompilerParams(
                dimension_semantics=("parallel",)),
        )(chunks_flat, self.basis, self.fb)

    def __call__(self, eeg_data):
        is_batched = eeg_data.ndim == 3
        if not is_batched:
            eeg_data = eeg_data[None, ...]                 # 's c -> () s c'
        eeg_data = jnp.asarray(eeg_data, dtype=jnp.float32)
        b, s, c = eeg_data.shape
        hop, win, mels = self.window_stride, self.window_size, self.mels

        # 'b s c -> b c s', flatten signals
        x = jnp.transpose(eeg_data, (0, 2, 1)).reshape(b * c, s)
        bc = b * c

        n_frames = 1 + s // hop
        n_chunks = n_frames + self.r - 1                   # hop-sized chunks per signal
        # center=True / pad_mode='constant': with the trimmed window only win//2
        # (not n_fft//2) padding zeros are ever touched.
        eff_left = self.n_fft // 2 - (self.n_fft - win) // 2
        total = n_chunks * hop                             # == (n_frames-1)*hop + win
        right = max(0, total - eff_left - s)
        xp = jnp.pad(x, ((0, 0), (eff_left, right)))[:, :total]
        chunks = xp.reshape(bc, n_chunks, hop)             # pure reshape -- no gather [opt 2]

        # ---- row-tile selection: whole signals per tile ----
        # row_tile must be a multiple of 8 (sublanes) and of n_chunks so the
        # one-row lookahead never crosses into a frame we keep.
        g0 = 8 // math.gcd(n_chunks, 8)                    # minimum signals per tile
        g = g0
        while ((g + g0) * n_chunks <= 1024                 # grow toward ~1K-row tiles [opts 5,6]
               and -(-bc // (g + g0)) >= 2):               # keep >=2 parallel steps (v7x) [opt 4]
            g += g0
        n_tiles = -(-bc // g)
        bc_pad = n_tiles * g
        row_tile = g * n_chunks
        rows_pad = bc_pad * n_chunks
        # TODO(synk): for extremely long signals (row_tile*2*f_pad f32 nearing VMEM),
        # additionally tile the chunk axis with a one-chunk halo.

        if bc_pad != bc:
            chunks = jnp.pad(chunks, ((0, bc_pad - bc), (0, 0), (0, 0)))
        chunks_flat = chunks.reshape(rows_pad, hop)        # (rows_pad, hop) f32 chunk rows

        try:
            out = self._mel_pallas(chunks_flat, row_tile, rows_pad, n_tiles, True)
        except Exception:
            # pl.Buffered(1) unsupported on this jax version -> default double-buffered specs
            out = self._mel_pallas(chunks_flat, row_tile, rows_pad, n_tiles, False)

        # drop the per-signal junk rows (last r-1 chunks) and the bc padding
        spec = out.reshape(bc_pad, n_chunks, mels)[:bc, :n_frames, :]
        spec = spec.reshape(b, c, n_frames, mels)
        spec = jnp.transpose(spec, (0, 3, 1, 2))           # (B, n_mels, C, n_frames)

        if self.get_decibels:
            # literal 10*log10, matching the PyTorch module (no AmplitudeToDB clamping)
            spec = 10.0 * jnp.log10(spec)

        if not is_batched:
            # 'b c s m -> (b s) c m' with b==1  ->  (C, n_mels, n_frames)
            spec = jnp.transpose(spec, (0, 2, 1, 3)).reshape(c, mels, n_frames)
        return spec


# ---------------- pure-jnp f32 reference (full-n_fft path, independent of the kernel) ----------------
def _reference_mel(eeg_bsc, mod):
    b, s, c = eeg_bsc.shape
    n_fft, hop, win, mels = mod.n_fft, mod.window_stride, mod.window_size, mod.mels
    n_freqs = n_fft // 2 + 1
    x = jnp.transpose(eeg_bsc, (0, 2, 1)).reshape(b * c, s).astype(jnp.float32)
    pad = n_fft // 2
    xp = jnp.pad(x, ((0, 0), (pad, pad)))
    n_frames = 1 + s // hop
    idx = np.arange(n_frames)[:, None] * hop + np.arange(n_fft)[None, :]
    frames = xp[:, idx]                                    # (bc, n_frames, n_fft)

    n = np.arange(win)
    hann = 0.5 * (1.0 - np.cos(2.0 * np.pi * n / win))
    w = np.zeros(n_fft)
    w[(n_fft - win) // 2:(n_fft - win) // 2 + win] = hann
    norm = np.sqrt(np.sum(hann ** 2))
    nn = np.arange(n_fft)[:, None]
    kk = np.arange(n_freqs)[None, :]
    ang = 2.0 * np.pi * nn * kk / n_fft
    cos_b = jnp.asarray((w[:, None] * np.cos(ang) / norm).astype(np.float32))
    sin_b = jnp.asarray((w[:, None] * np.sin(ang) / norm).astype(np.float32))
    re = frames @ cos_b
    im = -(frames @ sin_b)
    mag = jnp.sqrt(re * re + im * im)                      # (bc, n_frames, n_freqs)
    fb = jnp.asarray(melscale_fbanks(n_freqs, mod.min_freq, mod.max_freq, mels, mod.sampling_rate))
    mel = mag @ fb                                         # (bc, n_frames, mels)
    mel = mel.reshape(b, c, n_frames, mels)
    return jnp.transpose(mel, (0, 3, 1, 2))                # (B, n_mels, C, n_frames)


if __name__ == "__main__":
    key = jax.random.PRNGKey(0)
    B, S, C = 2, 256, 4                                    # batch, samples, EEG channels
    eeg = jax.random.normal(key, (B, S, C), dtype=jnp.float32)

    mel = MelSpectrogram()
    spec = mel(eeg)
    jax.block_until_ready(spec)

    expected_frames = 1 + S // mel.window_stride
    assert spec.shape == (B, MELS, C, expected_frames), spec.shape
    assert bool(jnp.all(jnp.isfinite(spec)))

    # validate the trimmed-window / in-kernel-framing / bf16-MXU kernel against
    # a full-precision f32 reference (review correctness concern #2)
    ref = _reference_mel(eeg, mel)
    err = float(jnp.max(jnp.abs(spec - ref)))
    scale = float(jnp.max(jnp.abs(ref)))
    assert err <= 5e-2 * scale + 1e-3, ("kernel/reference mismatch", err, scale)

    print("KERNEL_OK")
</pallas_src>

<mosaic_0001>
module attributes {stable_mosaic.version = 11 : i64} {
  func.func @_mel_kernel(%arg0: i32, %arg1: memref<40x32xf32, #tpu.memory_space<vmem>>, %arg2: memref<64x256xbf16, #tpu.memory_space<vmem>>, %arg3: memref<128x8xf32, #tpu.memory_space<vmem>>, %arg4: memref<40x8xf32, #tpu.memory_space<vmem>>, %arg5: memref<48x32xf32, #tpu.memory_space<vmem>>) attributes {dimension_semantics = [#tpu.dimension_semantics<parallel>], iteration_bounds = array<i64: 2>, scalar_prefetch = 0 : i64, scratch_operands = 1 : i64, tpu.core_type = #tpu.core_type<tc>, window_params = [{transform_indices = @transform_0, window_bounds = array<i64: 40, 32>}, {pipeline_mode = #tpu.pipeline_mode<synchronous>, transform_indices = @transform_1, window_bounds = array<i64: 64, 256>}, {pipeline_mode = #tpu.pipeline_mode<synchronous>, transform_indices = @transform_2, window_bounds = array<i64: 128, 8>}, {transform_indices = @transform_3, window_bounds = array<i64: 40, 8>}]} {
    %c0 = arith.constant 0 : index
    %c0_0 = arith.constant 0 : index
    %0 = vector.load %arg1[%c0, %c0_0] : memref<40x32xf32, #tpu.memory_space<vmem>>, vector<40x32xf32>
    %c0_1 = arith.constant 0 : index
    %c0_2 = arith.constant 0 : index
    %1 = vector.load %arg5[%c0_1, %c0_2] : memref<48x32xf32, #tpu.memory_space<vmem>>, vector<40x32xf32>
    tpu.vector_store %arg5[%c0_1, %c0_2], %0 {strides = array<i32>} : memref<48x32xf32, #tpu.memory_space<vmem>>, vector<40x32xf32>,
    %cst = arith.constant 0.000000e+00 : f32
    %2 = vector.broadcast %cst : f32 to vector<8x32xf32>
    %c40 = arith.constant 40 : index
    %c0_3 = arith.constant 0 : index
    %3 = vector.load %arg5[%c40, %c0_3] : memref<48x32xf32, #tpu.memory_space<vmem>>, vector<8x32xf32>
    tpu.vector_store %arg5[%c40, %c0_3], %2 {strides = array<i32>} : memref<48x32xf32, #tpu.memory_space<vmem>>, vector<8x32xf32>,
    %c0_4 = arith.constant 0 : index
    %c0_5 = arith.constant 0 : index
    %4 = vector.load %arg5[%c0_4, %c0_5] : memref<48x32xf32, #tpu.memory_space<vmem>>, vector<40x32xf32>
    %5 = arith.truncf %4 : vector<40x32xf32> to vector<40x32xbf16>
    %c0_6 = arith.constant 0 : index
    %c0_7 = arith.constant 0 : index
    %6 = vector.load %arg2[%c0_6, %c0_7] : memref<64x256xbf16, #tpu.memory_space<vmem>>, vector<32x256xbf16>
    %cst_8 = arith.constant dense<0.000000e+00> : vector<40x256xf32>
    %7 = tpu.matmul %5, %6, %cst_8 {dimension_numbers = #tpu.dot_dimension_numbers<[1], [0], [0], [1], [0, 0, 1, 1], [], []>} : vector<40x32xbf16>, vector<32x256xbf16>, vector<40x256xf32> -> vector<40x256xf32>
    %c1 = arith.constant 1 : index
    %c0_9 = arith.constant 0 : index
    %8 = vector.load %arg5[%c1, %c0_9] : memref<48x32xf32, #tpu.memory_space<vmem>>, vector<40x32xf32>
    %9 = arith.truncf %8 : vector<40x32xf32> to vector<40x32xbf16>
    %c32 = arith.constant 32 : index
    %c0_10 = arith.constant 0 : index
    %10 = vector.load %arg2[%c32, %c0_10] : memref<64x256xbf16, #tpu.memory_space<vmem>>, vector<32x256xbf16>
    %cst_11 = arith.constant dense<0.000000e+00> : vector<40x256xf32>
    %11 = tpu.matmul %9, %10, %cst_11 {dimension_numbers = #tpu.dot_dimension_numbers<[1], [0], [0], [1], [0, 0, 1, 1], [], []>} : vector<40x32xbf16>, vector<32x256xbf16>, vector<40x256xf32> -> vector<40x256xf32>
    %12 = arith.addf %7, %11 : vector<40x256xf32>
    %13 = vector.extract_strided_slice %12 {offsets = [0, 0], sizes = [40, 128], strides = [1, 1]} : vector<40x256xf32> to vector<40x128xf32>
    %14 = vector.extract_strided_slice %12 {offsets = [0, 128], sizes = [40, 128], strides = [1, 1]} : vector<40x256xf32> to vector<40x128xf32>
    %15 = arith.mulf %13, %13 : vector<40x128xf32>
    %16 = arith.mulf %14, %14 : vector<40x128xf32>
    %17 = arith.addf %15, %16 : vector<40x128xf32>
    %18 = math.sqrt %17 : vector<40x128xf32>
    %c0_12 = arith.constant 0 : index
    %c0_13 = arith.constant 0 : index
    %19 = vector.load %arg3[%c0_12, %c0_13] : memref<128x8xf32, #tpu.memory_space<vmem>>, vector<128x8xf32>
    %cst_14 = arith.constant dense<0.000000e+00> : vector<40x8xf32>
    %20 = tpu.matmul %18, %19, %cst_14 {dimension_numbers = #tpu.dot_dimension_numbers<[1], [0], [0], [1], [0, 0, 1, 1], [], []>} : vector<40x128xf32>, vector<128x8xf32>, vector<40x8xf32> -> vector<40x8xf32>
    %c0_15 = arith.constant 0 : index
    %c0_16 = arith.constant 0 : index
    %21 = vector.load %arg4[%c0_15, %c0_16] : memref<40x8xf32, #tpu.memory_space<vmem>>, vector<40x8xf32>
    tpu.vector_store %arg4[%c0_15, %c0_16], %20 {strides = array<i32>} : memref<40x8xf32, #tpu.memory_space<vmem>>, vector<40x8xf32>,
    return
  }
  func.func @transform_0(%arg0: i32) -> (i32, i32) {
    %c0_i32 = arith.constant 0 : i32
    %c0_i32_0 = arith.constant 0 : i32
    return %arg0, %c0_i32 : i32, i32
  }
  func.func @transform_1(%arg0: i32) -> (i32, i32) {
    %c0_i32 = arith.constant 0 : i32
    %c0_i32_0 = arith.constant 0 : i32
    %c0_i32_1 = arith.constant 0 : i32
    return %c0_i32, %c0_i32_0 : i32, i32
  }
  func.func @transform_2(%arg0: i32) -> (i32, i32) {
    %c0_i32 = arith.constant 0 : i32
    %c0_i32_0 = arith.constant 0 : i32
    %c0_i32_1 = arith.constant 0 : i32
    return %c0_i32, %c0_i32_0 : i32, i32
  }
  func.func @transform_3(%arg0: i32) -> (i32, i32) {
    %c0_i32 = arith.constant 0 : i32
    %c0_i32_0 = arith.constant 0 : i32
    return %arg0, %c0_i32 : i32, i32
  }
}

module attributes {stable_mosaic.version = 11 : i64} {
  func.func @_mel_kernel(%arg0: i32, %arg1: memref<40x32xf32, #tpu.memory_space<vmem>>, %arg2: memref<64x256xbf16, #tpu.memory_space<vmem>>, %arg3: memref<128x8xf32, #tpu.memory_space<vmem>>, %arg4: memref<40x8xf32, #tpu.memory_space<vmem>>, %arg5: memref<48x32xf32, #tpu.memory_space<vmem>>) attributes {dimension_semantics = [#tpu.dimension_semantics<parallel>], iteration_bounds = array<i64: 2>, scalar_prefetch = 0 : i64, scratch_operands = 1 : i64, tpu.core_type = #tpu.core_type<tc>, window_params = [{transform_indices = @transform_0, window_bounds = array<i64: 40, 32>}, {pipeline_mode = #tpu.pipeline_mode<synchronous>, transform_indices = @transform_1, window_bounds = array<i64: 64, 256>}, {pipeline_mode = #tpu.pipeline_mode<synchronous>, transform_indices = @transform_2, window_bounds = array<i64: 128, 8>}, {transform_indices = @transform_3, window_bounds = array<i64: 40, 8>}]} {
    %c0 = arith.constant 0 : index
    %c0_0 = arith.constant 0 : index
    %0 = vector.load %arg1[%c0, %c0_0] : memref<40x32xf32, #tpu.memory_space<vmem>>, vector<40x32xf32>
    %c0_1 = arith.constant 0 : index
    %c0_2 = arith.constant 0 : index
    %1 = vector.load %arg5[%c0_1, %c0_2] : memref<48x32xf32, #tpu.memory_space<vmem>>, vector<40x32xf32>
    tpu.vector_store %arg5[%c0_1, %c0_2], %0 {strides = array<i32>} : memref<48x32xf32, #tpu.memory_space<vmem>>, vector<40x32xf32>,
    %cst = arith.constant 0.000000e+00 : f32
    %2 = vector.broadcast %cst : f32 to vector<8x32xf32>
    %c40 = arith.constant 40 : index
    %c0_3 = arith.constant 0 : index
    %3 = vector.load %arg5[%c40, %c0_3] : memref<48x32xf32, #tpu.memory_space<vmem>>, vector<8x32xf32>
    tpu.vector_store %arg5[%c40, %c0_3], %2 {strides = array<i32>} : memref<48x32xf32, #tpu.memory_space<vmem>>, vector<8x32xf32>,
    %c0_4 = arith.constant 0 : index
    %c0_5 = arith.constant 0 : index
    %4 = vector.load %arg5[%c0_4, %c0_5] : memref<48x32xf32, #tpu.memory_space<vmem>>, vector<40x32xf32>
    %5 = arith.truncf %4 : vector<40x32xf32> to vector<40x32xbf16>
    %c0_6 = arith.constant 0 : index
    %c0_7 = arith.constant 0 : index
    %6 = vector.load %arg2[%c0_6, %c0_7] : memref<64x256xbf16, #tpu.memory_space<vmem>>, vector<32x256xbf16>
    %cst_8 = arith.constant dense<0.000000e+00> : vector<40x256xf32>
    %7 = tpu.matmul %5, %6, %cst_8 {dimension_numbers = #tpu.dot_dimension_numbers<[1], [0], [0], [1], [0, 0, 1, 1], [], []>} : vector<40x32xbf16>, vector<32x256xbf16>, vector<40x256xf32> -> vector<40x256xf32>
    %c1 = arith.constant 1 : index
    %c0_9 = arith.constant 0 : index
    %8 = vector.load %arg5[%c1, %c0_9] : memref<48x32xf32, #tpu.memory_space<vmem>>, vector<40x32xf32>
    %9 = arith.truncf %8 : vector<40x32xf32> to vector<40x32xbf16>
    %c32 = arith.constant 32 : index
    %c0_10 = arith.constant 0 : index
    %10 = vector.load %arg2[%c32, %c0_10] : memref<64x256xbf16, #tpu.memory_space<vmem>>, vector<32x256xbf16>
    %cst_11 = arith.constant dense<0.000000e+00> : vector<40x256xf32>
    %11 = tpu.matmul %9, %10, %cst_11 {dimension_numbers = #tpu.dot_dimension_numbers<[1], [0], [0], [1], [0, 0, 1, 1], [], []>} : vector<40x32xbf16>, vector<32x256xbf16>, vector<40x256xf32> -> vector<40x256xf32>
    %12 = arith.addf %7, %11 : vector<40x256xf32>
    %13 = vector.extract_strided_slice %12 {offsets = [0, 0], sizes = [40, 128], strides = [1, 1]} : vector<40x256xf32> to vector<40x128xf32>
    %14 = vector.extract_strided_slice %12 {offsets = [0, 128], sizes = [40, 128], strides = [1, 1]} : vector<40x256xf32> to vector<40x128xf32>
    %15 = arith.mulf %13, %13 : vector<40x128xf32>
    %16 = arith.mulf %14, %14 : vector<40x128xf32>
    %17 = arith.addf %15, %16 : vector<40x128xf32>
    %18 = math.sqrt %17 : vector<40x128xf32>
    %c0_12 = arith.constant 0 : index
    %c0_13 = arith.constant 0 : index
    %19 = vector.load %arg3[%c0_12, %c0_13] : memref<128x8xf32, #tpu.memory_space<vmem>>, vector<128x8xf32>
    %cst_14 = arith.constant dense<0.000000e+00> : vector<40x8xf32>
    %20 = tpu.matmul %18, %19, %cst_14 {dimension_numbers = #tpu.dot_dimension_numbers<[1], [0], [0], [1], [0, 0, 1, 1], [], []>} : vector<40x128xf32>, vector<128x8xf32>, vector<40x8xf32> -> vector<40x8xf32>
    %c0_15 = arith.constant 0 : index
    %c0_16 = arith.constant 0 : index
    %21 = vector.load %arg4[%c0_15, %c0_16] : memref<40x8xf32, #tpu.memory_space<vmem>>, vector<40x8xf32>
    tpu.vector_store %arg4[%c0_15, %c0_16], %20 {strides = array<i32>} : memref<40x8xf32, #tpu.memory_space<vmem>>, vector<40x8xf32>,
    return
  }
  func.func @transform_0(%arg0: i32) -> (i32, i32) {
    %c0_i32 = arith.constant 0 : i32
    %c0_i32_0 = arith.constant 0 : i32
    return %arg0, %c0_i32 : i32, i32
  }
  func.func @transform_1(%arg0: i32) -> (i32, i32) {
    %c0_i32 = arith.constant 0 : i32
    %c0_i32_0 = arith.constant 0 : i32
    %c0_i32_1 = arith.constant 0 : i32
    return %c0_i32, %c0_i32_0 : i32, i32
  }
  func.func @transform_2(%arg0: i32) -> (i32, i32) {
    %c0_i32 = arith.constant 0 : i32
    %c0_i32_0 = arith.constant 0 : i32
    %c0_i32_1 = arith.constant 0 : i32
    return %c0_i32, %c0_i32_0 : i32, i32
  }
  func.func @transform_3(%arg0: i32) -> (i32, i32) {
    %c0_i32 = arith.constant 0 : i32
    %c0_i32_0 = arith.constant 0 : i32
    return %arg0, %c0_i32 : i32, i32
  }
}

</mosaic_0001>

<llo_original>
// kernel: tpu_custom_call.1
$region0: #{tpu_custom_call.1}
  #allocation0 [shape = 'u32[]', space=smem, size = 0x4, offset = 0x4, fixed_abs, tag = 'smem constant byte address 0x4 - core index']
  #allocation1 [shape = 'u32[72,128]{1,0:T(1,128)}', space=vmem, size = 0x9000, scoped, tag = 'internal scratch']
  #allocation2 [shape = 'f32[48,32]{1,0:T(8,128)}', space=vmem, size = 0x6000, scoped, tag = 'scratch operand']
  %s0 = inlined_call_operand.vmem [shape: f32[80,32], index: 0, kind: input, shape index: {}]
  %s1 = inlined_call_operand.vmem [shape: bf16[64,256], index: 1, kind: input, shape index: {}]
  %s2 = inlined_call_operand.vmem [shape: f32[128,8], index: 2, kind: input, shape index: {}]
  %s3 = inlined_call_operand.vmem [shape: f32[80,8], index: 3, kind: output, shape index: {}]
  %s4 = sld [smem:[#allocation0]]
  $region45: #{tpu_custom_call.1} parent=0
    _
  %s6 = ssub.s32 1, %s4
  %s7 = scalar_select 0, %s6, %s4
  loop: start=0, step=1, limit=4
  $region2: #{tpu_custom_call.1} parent=0 // loop_pre_header
    _
  $region3: #{tpu_custom_call.1} parent=0 // loop_header
    %s9 = sphi 0, %s13
    %p10 = scmp.ge.s32.totalorder %s9, 4
    %s19 = sphi 0, %s21
    %s22 = sphi 0, %s19
    %s23 = sphi 0, %s22
    %s39 = sphi 0, %s23
    %s43 = sphi 0, %s43
    %s45 = sphi 0, %s43
    %s46 = sphi 0, %s45
    %s60 = sphi 0, %s46
    %s64 = sphi 0, %s64
    %s66 = sphi 0, %s64
    %s67 = sphi 0, %s66
    %s81 = sphi 0, %s67
    %s87 = sphi 0, %s89
    %s90 = sphi 0, %s87
    %s91 = sphi 0, %s90
    %s107 = sphi 0, %s91
  $region4: #{tpu_custom_call.1} parent=0 // loop_header_branch
    %12 = sbr.rel (%p10) target = $region8
  $region5: #{tpu_custom_call.1} parent=0 // loop_body
    %s14 = ssub.s32 %s9, 1
    %s15 = ssub.s32 %s9, 2
    %s16 = sadd.s32 %s9, 1
    %s17 = ssub.s32 %s9, %s16
    %p18 = scmp.eq.s32.totalorder %s17, 0
    %s20 = sadd.s32 %s19, 1
    %s21 = scalar_select %p18, %s19, %s20
    %p24 = pneg %p18
    %p25 = scmp.eq.s32.totalorder %s9, 1
    %p26 = por %p24, %p25
    %p27 = scmp.ne.s32.totalorder %s19, %s22
    %p28 = scmp.eq.s32.totalorder %s9, 0
    %p29 = por %p27, %p28
    %p30 = scmp.ne.s32.totalorder %s19, %s22
    %p31 = scmp.eq.s32.totalorder %s14, 1
    %p32 = por %p30, %p31
    %p33 = scmp.ne.s32.totalorder %s22, %s23
    %p34 = scmp.eq.s32.totalorder %s14, 0
    %p35 = por %p33, %p34
    %p36 = scmp.ne.s32.totalorder %s22, %s23
    %p37 = scmp.eq.s32.totalorder %s15, 1
    %p38 = por %p36, %p37
    %p40 = scmp.ne.s32.totalorder %s23, %s39
    %p41 = scmp.eq.s32.totalorder %s15, 0
    %p42 = por %p40, %p41
    %s44 = sadd.s32 %s43, 1
    %p47 = scmp.eq.s32.totalorder %s9, 1
    %p48 = scmp.ne.s32.totalorder %s43, %s45
    %p49 = scmp.eq.s32.totalorder %s9, 0
    %p50 = por %p48, %p49
    %p51 = scmp.ne.s32.totalorder %s43, %s45
    %p52 = scmp.eq.s32.totalorder %s14, 1
    %p53 = por %p51, %p52
    %p54 = scmp.ne.s32.totalorder %s45, %s46
    %p55 = scmp.eq.s32.totalorder %s14, 0
    %p56 = por %p54, %p55
    %p57 = scmp.ne.s32.totalorder %s45, %s46
    %p58 = scmp.eq.s32.totalorder %s15, 1
    %p59 = por %p57, %p58
    %p61 = scmp.ne.s32.totalorder %s46, %s60
    %p62 = scmp.eq.s32.totalorder %s15, 0
    %p63 = por %p61, %p62
    %s65 = sadd.s32 %s64, 1
    %p68 = scmp.eq.s32.totalorder %s9, 1
    %p69 = scmp.ne.s32.totalorder %s64, %s66
    %p70 = scmp.eq.s32.totalorder %s9, 0
    %p71 = por %p69, %p70
    %p72 = scmp.ne.s32.totalorder %s64, %s66
    %p73 = scmp.eq.s32.totalorder %s14, 1
    %p74 = por %p72, %p73
    %p75 = scmp.ne.s32.totalorder %s66, %s67
    %p76 = scmp.eq.s32.totalorder %s14, 0
    %p77 = por %p75, %p76
    %p78 = scmp.ne.s32.totalorder %s66, %s67
    %p79 = scmp.eq.s32.totalorder %s15, 1
    %p80 = por %p78, %p79
    %p82 = scmp.ne.s32.totalorder %s67, %s81
    %p83 = scmp.eq.s32.totalorder %s15, 0
    %p84 = por %p82, %p83
    %s85 = ssub.s32 %s9, %s16
    %p86 = scmp.eq.s32.totalorder %s85, 0
    %s88 = sadd.s32 %s87, 1
    %s89 = scalar_select %p86, %s87, %s88
    %p92 = pneg %p86
    %p93 = scmp.eq.s32.totalorder %s9, 1
    %p94 = por %p92, %p93
    %p95 = scmp.ne.s32.totalorder %s87, %s90
    %p96 = scmp.eq.s32.totalorder %s9, 0
    %p97 = por %p95, %p96
    %p98 = scmp.ne.s32.totalorder %s87, %s90
    %p99 = scmp.eq.s32.totalorder %s14, 1
    %p100 = por %p98, %p99
    %p101 = scmp.ne.s32.totalorder %s90, %s91
    %p102 = scmp.eq.s32.totalorder %s14, 0
    %p103 = por %p101, %p102
    %p104 = scmp.ne.s32.totalorder %s90, %s91
    %p105 = scmp.eq.s32.totalorder %s15, 1
    %p106 = por %p104, %p105
    %p108 = scmp.ne.s32.totalorder %s91, %s107
    %p109 = scmp.eq.s32.totalorder %s15, 0
    %p110 = por %p108, %p109
    %p111 = scmp.le.s32.totalorder 1, %s9
    %p112 = scmp.lt.s32.totalorder %s9, 3
    %p113 = pnand %p111, %p112
    %p114 = pneg %p113
    // Predicated region
    $region9: #{tpu_custom_call.1} parent=5 // pred_check
      _
    $region10: #{tpu_custom_call.1} parent=5 // pred_check_branch
      %116 = sbr.rel (%p113) target = $region12
    $region11: #{tpu_custom_call.1} parent=5 // pred_region
      %s117 = ssub.s32 %s9, 1
      // Predicated region
      $region13: #{tpu_custom_call.1} parent=11 // pred_check
        %p118 = pneg %p56
      $region14: #{tpu_custom_call.1} parent=11 // pred_check_branch
        %120 = sbr.rel (%p118) target = $region16
      $region15: #{tpu_custom_call.1} parent=11 // pred_region
        _
      $region16: #{tpu_custom_call.1} parent=11 // pred_fallthru
        _
      // Predicated region
      $region17: #{tpu_custom_call.1} parent=11 // pred_check
        %p121 = pneg %p77
      $region18: #{tpu_custom_call.1} parent=11 // pred_check_branch
        %123 = sbr.rel (%p121) target = $region20
      $region19: #{tpu_custom_call.1} parent=11 // pred_region
        _
      $region20: #{tpu_custom_call.1} parent=11 // pred_fallthru
        _
    $region12: #{tpu_custom_call.1} parent=5 // pred_fallthru
      _
    %p124 = scmp.lt.s32.totalorder %s9, 2
    // Predicated region
    $region21: #{tpu_custom_call.1} parent=5 // pred_check
      %p125 = pneg %p124
    $region22: #{tpu_custom_call.1} parent=5 // pred_check_branch
      %127 = sbr.rel (%p125) target = $region24
    $region23: #{tpu_custom_call.1} parent=5 // pred_region
      // Predicated region
      $region25: #{tpu_custom_call.1} parent=23 // pred_check
        %p128 = pneg %p29
      $region26: #{tpu_custom_call.1} parent=23 // pred_check_branch
        %130 = sbr.rel (%p128) target = $region28
      $region27: #{tpu_custom_call.1} parent=23 // pred_region
        %s131 = smul.u32 5, %s9
        %p132 = scmp.lt.s32.totalorder %s131, 9
        %s133 = scalar_select %p132, %s131, 9
        %s134 = smul.addr %s133, 8
        %s135 = scalar_lea.vmem %s0, %s134
        %s136 = smul.u32 5, %s9
      $region28: #{tpu_custom_call.1} parent=23 // pred_fallthru
        _
    $region24: #{tpu_custom_call.1} parent=5 // pred_fallthru
      _
    %p137 = scmp.le.s32.totalorder 1, %s9
    %p138 = scmp.lt.s32.totalorder %s9, 3
    %p139 = pnand %p137, %p138
    %p140 = pneg %p139
    // Predicated region
    $region29: #{tpu_custom_call.1} parent=5 // pred_check
      _
    $region30: #{tpu_custom_call.1} parent=5 // pred_check_branch
      %142 = sbr.rel (%p139) target = $region32
    $region31: #{tpu_custom_call.1} parent=5 // pred_region
      %s143 = ssub.s32 %s9, 1
      %s144 = smul.u32 5, %s14
      %p145 = scmp.lt.s32.totalorder %s144, 9
      %s146 = scalar_select %p145, %s144, 9
      %s147 = smul.addr %s146, 8
      %s148 = scalar_lea.vmem %s0, %s147
      %p149 = pneg %p35
      %p150 = pneg %p32
      %p151 = pneg %p56
      %p152 = pneg %p53
      %p153 = pneg %p77
      %p154 = pneg %p74
      %p155 = pneg %p103
      %p156 = pneg %p100
      %s157 = smul.u32 5, %s14
      %p158 = scmp.lt.s32.totalorder %s157, 9
      %s159 = scalar_select %p158, %s157, 9
      %s160 = smul.addr %s159, 8
      %s161 = scalar_lea.vmem %s3, %s160
      %s162 = smul.u32 5, %s14
      %p163 = scmp.lt.s32.totalorder %s162, 9
      %s164 = scalar_select %p163, %s162, 9
      %s165 = smul.addr %s164, 8
      %s166 = scalar_lea.vmem %s0, %s165
      %s167 = smul.u32 5, %s14
      %s168 = smul.u32 5, %s14
      %p169 = scmp.lt.s32.totalorder %s168, 9
      %s170 = scalar_select %p169, %s168, 9
      %s171 = smul.addr %s170, 8
      %s172 = scalar_lea.vmem %s3, %s171
      %s173 = smul.u32 5, %s14
      %v175 = vld [vmem:[%s166] sm:$0xff]
      %v176 = vld [vmem:[%s166 + $0x8] sm:$0xff]
      %v177 = vld [vmem:[%s166 + $0x10] sm:$0xff]
      %v178 = vld [vmem:[%s166 + $0x18] sm:$0xff]
      %v179 = vld [vmem:[%s166 + $0x20] sm:$0xff]
      %vm180 = vcmask 261120
      %181 = vst.msk [vmem:[#allocation2] sm:$0xff] %vm180, %v175
      %182 = vst.msk [vmem:[#allocation2 + $0x8] sm:$0xff] %vm180, %v176
      %183 = vst.msk [vmem:[#allocation2 + $0x10] sm:$0xff] %vm180, %v177
      %184 = vst.msk [vmem:[#allocation2 + $0x18] sm:$0xff] %vm180, %v178
      %185 = vst.msk [vmem:[#allocation2 + $0x20] sm:$0xff] %vm180, %v179
      %186 = vst.msk [vmem:[#allocation2 + $0x28] sm:$0xff] %vm180, 0.0
      %v187 = vld [vmem:[#allocation2] sm:$0xff]
      %v188 = vld [vmem:[#allocation2 + $0x8] sm:$0xff]
      %v189 = vld [vmem:[#allocation2 + $0x10] sm:$0xff]
      %v190 = vld [vmem:[#allocation2 + $0x18] sm:$0xff]
      %v191 = vld [vmem:[#allocation2 + $0x20] sm:$0xff]
      %v192 = vpack.c.bf16 %v188, %v187
      %v193 = vpack.c.bf16 %v190, %v189
      %v194 = vpack.c.bf16 %v191, %v191
      %v195 = vld [vmem:[%s1] sm:$0xff]
      %v196 = vld [vmem:[%s1 + $0x8] sm:$0xff]
      %v197 = vld [vmem:[%s1 + $0x10] sm:$0xff]
      %v198 = vld [vmem:[%s1 + $0x18] sm:$0xff]
      %v199 = vld [vmem:[#allocation2 + $0x1] sm:$0xff]
      %v200 = vld [vmem:[#allocation2 + $0x9] sm:$0xff]
      %v201 = vld [vmem:[#allocation2 + $0x11] sm:$0xff]
      %v202 = vld [vmem:[#allocation2 + $0x19] sm:$0xff]
      %v203 = vld [vmem:[#allocation2 + $0x21] sm:$0xff]
      %v204 = vpack.c.bf16 %v200, %v199
      %v205 = vpack.c.bf16 %v202, %v201
      %v206 = vpack.c.bf16 %v203, %v203
      %v207 = vld [vmem:[%s1 + $0x20] sm:$0xff]
      %v208 = vld [vmem:[%s1 + $0x28] sm:$0xff]
      %v209 = vld [vmem:[%s1 + $0x30] sm:$0xff]
      %v210 = vld [vmem:[%s1 + $0x38] sm:$0xff]
      %v215 = vunpack.c.l.b16 %v207
      %v216 = vunpack.c.h.b16 %v207
      %v217 = vunpack.c.l.b16 %v208
      %v218 = vunpack.c.h.b16 %v208
      %v219 = vunpack.c.l.b16 %v209
      %v220 = vunpack.c.h.b16 %v209
      %v221 = vunpack.c.l.b16 %v210
      %v222 = vunpack.c.h.b16 %v210
      %v223 = vpack.c.b16 %v217, %v215
      %v224 = vpack.c.b16 %v218, %v216
      %v225 = vpack.c.b16 %v221, %v219
      %v226 = vpack.c.b16 %v222, %v220
      %v232 = vsel %vm180, %v204, 0
      %v235 = vsel %vm180, %v205, 0
      %v238 = vsel %vm180, %v206, 0
      %240 = vmatpush.bf16.msra.mxu0 0
      %241 = vmatpush.bf16.msra.mxu0 0
      %242 = vmatpush.bf16.msra.mxu0 0
      %243 = vmatpush.bf16.msra.mxu0 0
      %244 = vmatpush.bf16.msra.mxu0 0
      %245 = vmatpush.bf16.msra.mxu0 0
      %246 = vmatpush.bf16.msra.mxu0 %v225
      %247 = vmatpush.bf16.msra.mxu0 %v223
      %248 = vmatmul.bf16.gmra.mxu0 %v232
      %v249 = vpop.f32.mrf.mxu0
      %v250 = vadd.f32 0.0, %v249
      %v251 = vpop.f32.mrf.mxu0
      %v252 = vadd.f32 0.0, %v251
      %253 = vmatmul.bf16.gmra.mxu0 %v235
      %v254 = vpop.f32.mrf.mxu0
      %v255 = vadd.f32 0.0, %v254
      %v256 = vpop.f32.mrf.mxu0
      %v257 = vadd.f32 0.0, %v256
      %258 = vmatmul.bf16.gmra.mxu0 %v238
      %v259 = vpop.f32.mrf.mxu0
      %v260 = vadd.f32 0.0, %v259
      %v261 = vpop.f32.mrf.mxu0
      %262 = vdwg.mxu0
      %263 = vmatpush.bf16.msra.mxu0 0
      %264 = vmatpush.bf16.msra.mxu0 0
      %265 = vmatpush.bf16.msra.mxu0 0
      %266 = vmatpush.bf16.msra.mxu0 0
      %267 = vmatpush.bf16.msra.mxu0 0
      %268 = vmatpush.bf16.msra.mxu0 0
      %269 = vmatpush.bf16.msra.mxu0 %v226
      %270 = vmatpush.bf16.msra.mxu0 %v224
      %271 = vmatmul.bf16.gmra.mxu0 %v232
      %v272 = vpop.f32.mrf.mxu0
      %v273 = vadd.f32 0.0, %v272
      %v274 = vpop.f32.mrf.mxu0
      %v275 = vadd.f32 0.0, %v274
      %276 = vmatmul.bf16.gmra.mxu0 %v235
      %v277 = vpop.f32.mrf.mxu0
      %v278 = vadd.f32 0.0, %v277
      %v279 = vpop.f32.mrf.mxu0
      %v280 = vadd.f32 0.0, %v279
      %281 = vmatmul.bf16.gmra.mxu0 %v238
      %v282 = vpop.f32.mrf.mxu0
      %v283 = vadd.f32 0.0, %v282
      %v284 = vpop.f32.mrf.mxu0
      %285 = vdwg.mxu0
      %v290 = vunpack.c.l.b16 %v195
      %v291 = vunpack.c.h.b16 %v195
      %v292 = vunpack.c.l.b16 %v196
      %v293 = vunpack.c.h.b16 %v196
      %v294 = vunpack.c.l.b16 %v197
      %v295 = vunpack.c.h.b16 %v197
      %v296 = vunpack.c.l.b16 %v198
      %v297 = vunpack.c.h.b16 %v198
      %v298 = vpack.c.b16 %v292, %v290
      %v299 = vpack.c.b16 %v293, %v291
      %v300 = vpack.c.b16 %v296, %v294
      %v301 = vpack.c.b16 %v297, %v295
      %v307 = vsel %vm180, %v192, 0
      %v310 = vsel %vm180, %v193, 0
      %v313 = vsel %vm180, %v194, 0
      %315 = vmatpush.bf16.msra.mxu0 0
      %316 = vmatpush.bf16.msra.mxu0 0
      %317 = vmatpush.bf16.msra.mxu0 0
      %318 = vmatpush.bf16.msra.mxu0 0
      %319 = vmatpush.bf16.msra.mxu0 0
      %320 = vmatpush.bf16.msra.mxu0 0
      %321 = vmatpush.bf16.msra.mxu0 %v300
      %322 = vmatpush.bf16.msra.mxu0 %v298
      %323 = vmatmul.bf16.gmra.mxu0 %v307
      %v324 = vpop.f32.mrf.mxu0
      %v325 = vadd.f32 %v250, %v324
      %v326 = vpop.f32.mrf.mxu0
      %v327 = vadd.f32 %v252, %v326
      %328 = vmatmul.bf16.gmra.mxu0 %v310
      %v329 = vpop.f32.mrf.mxu0
      %v330 = vadd.f32 %v255, %v329
      %v331 = vpop.f32.mrf.mxu0
      %v332 = vadd.f32 %v257, %v331
      %333 = vmatmul.bf16.gmra.mxu0 %v313
      %v334 = vpop.f32.mrf.mxu0
      %v335 = vadd.f32 %v260, %v334
      %v336 = vpop.f32.mrf.mxu0
      %337 = vdwg.mxu0
      %338 = vmatpush.bf16.msra.mxu0 0
      %339 = vmatpush.bf16.msra.mxu0 0
      %340 = vmatpush.bf16.msra.mxu0 0
      %341 = vmatpush.bf16.msra.mxu0 0
      %342 = vmatpush.bf16.msra.mxu0 0
      %343 = vmatpush.bf16.msra.mxu0 0
      %344 = vmatpush.bf16.msra.mxu0 %v301
      %345 = vmatpush.bf16.msra.mxu0 %v299
      %346 = vmatmul.bf16.gmra.mxu0 %v307
      %v347 = vpop.f32.mrf.mxu0
      %v348 = vadd.f32 %v273, %v347
      %v349 = vpop.f32.mrf.mxu0
      %v350 = vadd.f32 %v275, %v349
      %351 = vmatmul.bf16.gmra.mxu0 %v310
      %v352 = vpop.f32.mrf.mxu0
      %v353 = vadd.f32 %v278, %v352
      %v354 = vpop.f32.mrf.mxu0
      %v355 = vadd.f32 %v280, %v354
      %356 = vmatmul.bf16.gmra.mxu0 %v313
      %v357 = vpop.f32.mrf.mxu0
      %v358 = vadd.f32 %v283, %v357
      %v359 = vpop.f32.mrf.mxu0
      %360 = vdwg.mxu0
      %v361 = vmul.f32 %v325, %v325
      %v362 = vmul.f32 %v327, %v327
      %v363 = vmul.f32 %v330, %v330
      %v364 = vmul.f32 %v332, %v332
      %v365 = vmul.f32 %v335, %v335
      %v366 = vmul.f32 %v348, %v348
      %v367 = vmul.f32 %v350, %v350
      %v368 = vmul.f32 %v353, %v353
      %v369 = vmul.f32 %v355, %v355
      %v370 = vmul.f32 %v358, %v358
      %v371 = vadd.f32 %v361, %v366
      %v372 = vadd.f32 %v362, %v367
      %v373 = vadd.f32 %v363, %v368
      %v374 = vadd.f32 %v364, %v369
      %v375 = vadd.f32 %v365, %v370
      %v376 = vrsqrt.pop %v371
      %v377 = vmul.f32 %v376, %v371
      %v378 = vmul.f32 %v377, %v376
      %v379 = vmul.f32 0.5, %v378
      %v380 = vsub.f32 1.5, %v379
      %v381 = vmul.f32 %v376, %v380
      %v382 = vmul.f32 %v371, %v381
      %vm383 = vcmp.eq.f32.partialorder %v371, inf
      %v384 = vsel %vm383, %v371, %v382
      %vm385 = vcmp.eq.f32.partialorder %v371, 0.0
      %v386 = vand.u32 %v371, 2147483648
      %v387 = vsel %vm385, %v386, %v384
      %v388 = vrsqrt.pop %v372
      %v389 = vmul.f32 %v388, %v372
      %v390 = vmul.f32 %v389, %v388
      %v391 = vmul.f32 0.5, %v390
      %v392 = vsub.f32 1.5, %v391
      %v393 = vmul.f32 %v388, %v392
      %v394 = vmul.f32 %v372, %v393
      %vm395 = vcmp.eq.f32.partialorder %v372, inf
      %v396 = vsel %vm395, %v372, %v394
      %vm397 = vcmp.eq.f32.partialorder %v372, 0.0
      %v398 = vand.u32 %v372, 2147483648
      %v399 = vsel %vm397, %v398, %v396
      %v400 = vrsqrt.pop %v373
      %v401 = vmul.f32 %v400, %v373
      %v402 = vmul.f32 %v401, %v400
      %v403 = vmul.f32 0.5, %v402
      %v404 = vsub.f32 1.5, %v403
      %v405 = vmul.f32 %v400, %v404
      %v406 = vmul.f32 %v373, %v405
      %vm407 = vcmp.eq.f32.partialorder %v373, inf
      %v408 = vsel %vm407, %v373, %v406
      %vm409 = vcmp.eq.f32.partialorder %v373, 0.0
      %v410 = vand.u32 %v373, 2147483648
      %v411 = vsel %vm409, %v410, %v408
      %v412 = vrsqrt.pop %v374
      %v413 = vmul.f32 %v412, %v374
      %v414 = vmul.f32 %v413, %v412
      %v415 = vmul.f32 0.5, %v414
      %v416 = vsub.f32 1.5, %v415
      %v417 = vmul.f32 %v412, %v416
      %v418 = vmul.f32 %v374, %v417
      %vm419 = vcmp.eq.f32.partialorder %v374, inf
      %v420 = vsel %vm419, %v374, %v418
      %vm421 = vcmp.eq.f32.partialorder %v374, 0.0
      %v422 = vand.u32 %v374, 2147483648
      %v423 = vsel %vm421, %v422, %v420
      %v424 = vrsqrt.pop %v375
      %v425 = vmul.f32 %v424, %v375
      %v426 = vmul.f32 %v425, %v424
      %v427 = vmul.f32 0.5, %v426
      %v428 = vsub.f32 1.5, %v427
      %v429 = vmul.f32 %v424, %v428
      %v430 = vmul.f32 %v375, %v429
      %vm431 = vcmp.eq.f32.partialorder %v375, inf
      %v432 = vsel %vm431, %v375, %v430
      %vm433 = vcmp.eq.f32.partialorder %v375, 0.0
      %v434 = vand.u32 %v375, 2147483648
      %v435 = vsel %vm433, %v434, %v432
      %v436 = vld [vmem:[%s2] sm:$0xff]
      %v437 = vld [vmem:[%s2 + $0x8] sm:$0xff]
      %v438 = vld [vmem:[%s2 + $0x10] sm:$0xff]
      %v439 = vld [vmem:[%s2 + $0x18] sm:$0xff]
      %v440 = vld [vmem:[%s2 + $0x20] sm:$0xff]
      %v441 = vld [vmem:[%s2 + $0x28] sm:$0xff]
      %v442 = vld [vmem:[%s2 + $0x30] sm:$0xff]
      %v443 = vld [vmem:[%s2 + $0x38] sm:$0xff]
      %v444 = vld [vmem:[%s2 + $0x40] sm:$0xff]
      %v445 = vld [vmem:[%s2 + $0x48] sm:$0xff]
      %v446 = vld [vmem:[%s2 + $0x50] sm:$0xff]
      %v447 = vld [vmem:[%s2 + $0x58] sm:$0xff]
      %v448 = vld [vmem:[%s2 + $0x60] sm:$0xff]
      %v449 = vld [vmem:[%s2 + $0x68] sm:$0xff]
      %v450 = vld [vmem:[%s2 + $0x70] sm:$0xff]
      %v451 = vld [vmem:[%s2 + $0x78] sm:$0xff]
      %452 = vmatpush.msra.mxu0 %v451
      %453 = vmatpush.msra.mxu0 %v450
      %454 = vmatpush.msra.mxu0 %v449
      %455 = vmatpush.msra.mxu0 %v448
      %456 = vmatpush.msra.mxu0 %v447
      %457 = vmatpush.msra.mxu0 %v446
      %458 = vmatpush.msra.mxu0 %v445
      %459 = vmatpush.msra.mxu0 %v444
      %460 = vmatpush.msra.mxu0 %v443
      %461 = vmatpush.msra.mxu0 %v442
      %462 = vmatpush.msra.mxu0 %v441
      %463 = vmatpush.msra.mxu0 %v440
      %464 = vmatpush.msra.mxu0 %v439
      %465 = vmatpush.msra.mxu0 %v438
      %466 = vmatpush.msra.mxu0 %v437
      %467 = vmatpush.msra.mxu0 %v436
      %468 = vmatmul.f32.gmra.mxu0 %v387
      %v469 = vpop.f32.mrf.mxu0
      %v470 = vadd.f32 0.0, %v469
      %471 = vmatmul.f32.gmra.mxu0 %v399
      %v472 = vpop.f32.mrf.mxu0
      %v473 = vadd.f32 0.0, %v472
      %474 = vmatmul.f32.gmra.mxu0 %v411
      %v475 = vpop.f32.mrf.mxu0
      %v476 = vadd.f32 0.0, %v475
      %477 = vmatmul.f32.gmra.mxu0 %v423
      %v478 = vpop.f32.mrf.mxu0
      %v479 = vadd.f32 0.0, %v478
      %480 = vmatmul.f32.gmra.mxu0 %v435
      %v481 = vpop.f32.mrf.mxu0
      %v482 = vadd.f32 0.0, %v481
      %483 = vdwg.mxu0
      %vm484 = vcmask 64512
      %485 = vst.msk [vmem:[%s172] sm:$0xff] %vm484, %v470
      %486 = vst.msk [vmem:[%s172 + $0x8] sm:$0xff] %vm484, %v473
      %487 = vst.msk [vmem:[%s172 + $0x10] sm:$0xff] %vm484, %v476
      %488 = vst.msk [vmem:[%s172 + $0x18] sm:$0xff] %vm484, %v479
      %489 = vst.msk [vmem:[%s172 + $0x20] sm:$0xff] %vm484, %v482
      %s490 = smul.u32 5, %s14
      %p491 = scmp.lt.s32.totalorder %s490, 9
      %s492 = scalar_select %p491, %s490, 9
      %s493 = smul.addr %s492, 8
      %s494 = scalar_lea.vmem %s3, %s493
      // Predicated region
      $region33: #{tpu_custom_call.1} parent=31 // pred_check
        %p495 = pneg %p100
      $region34: #{tpu_custom_call.1} parent=31 // pred_check_branch
        %497 = sbr.rel (%p495) target = $region36
      $region35: #{tpu_custom_call.1} parent=31 // pred_region
        %s498 = smul.u32 5, %s14
      $region36: #{tpu_custom_call.1} parent=31 // pred_fallthru
        _
    $region32: #{tpu_custom_call.1} parent=5 // pred_fallthru
      _
    %p499 = scmp.le.s32.totalorder 2, %s9
    // Predicated region
    $region37: #{tpu_custom_call.1} parent=5 // pred_check
      %p500 = pneg %p499
    $region38: #{tpu_custom_call.1} parent=5 // pred_check_branch
      %502 = sbr.rel (%p500) target = $region40
    $region39: #{tpu_custom_call.1} parent=5 // pred_region
      %s503 = ssub.s32 %s9, 2
      // Predicated region
      $region41: #{tpu_custom_call.1} parent=39 // pred_check
        %p504 = pneg %p106
      $region42: #{tpu_custom_call.1} parent=39 // pred_check_branch
        %506 = sbr.rel (%p504) target = $region44
      $region43: #{tpu_custom_call.1} parent=39 // pred_region
        %s507 = smul.u32 5, %s15
        %p508 = scmp.lt.s32.totalorder %s507, 9
        %s509 = scalar_select %p508, %s507, 9
        %s510 = smul.addr %s509, 8
        %s511 = scalar_lea.vmem %s3, %s510
      $region44: #{tpu_custom_call.1} parent=39 // pred_fallthru
        _
    $region40: #{tpu_custom_call.1} parent=5 // pred_fallthru
      _
  $region6: #{tpu_custom_call.1} parent=0 // loop_footer
    %s13 = sadd.s32 1, %s9
  $region7: #{tpu_custom_call.1} parent=0 // loop_footer_branch
    %8 = sbr.rel target = $region3
  $region8: #{tpu_custom_call.1} parent=0 // loop_exit
    _

// kernel: tpu_custom_call.1
$region0: #{tpu_custom_call.1}
  #allocation0 [shape = 'u32[]', space=smem, size = 0x4, offset = 0x4, fixed_abs, tag = 'smem constant byte address 0x4 - core index']
  #allocation1 [shape = 'u32[72,128]{1,0:T(1,128)}', space=vmem, size = 0x9000, scoped, tag = 'internal scratch']
  #allocation2 [shape = 'f32[48,32]{1,0:T(8,128)}', space=vmem, size = 0x6000, scoped, tag = 'scratch operand']
  %s0 = inlined_call_operand.vmem [shape: f32[80,32], index: 0, kind: input, shape index: {}]
  %s1 = inlined_call_operand.vmem [shape: bf16[64,256], index: 1, kind: input, shape index: {}]
  %s2 = inlined_call_operand.vmem [shape: f32[128,8], index: 2, kind: input, shape index: {}]
  %s3 = inlined_call_operand.vmem [shape: f32[80,8], index: 3, kind: output, shape index: {}]
  %s4 = sld [smem:[#allocation0]]
  $region45: #{tpu_custom_call.1} parent=0
    _
  %s6 = ssub.s32 1, %s4
  %s7 = scalar_select 0, %s6, %s4
  loop: start=0, step=1, limit=4
  $region2: #{tpu_custom_call.1} parent=0 // loop_pre_header
    _
  $region3: #{tpu_custom_call.1} parent=0 // loop_header
    %s9 = sphi 0, %s13
    %p10 = scmp.ge.s32.totalorder %s9, 4
    %s19 = sphi 0, %s21
    %s22 = sphi 0, %s19
    %s23 = sphi 0, %s22
    %s39 = sphi 0, %s23
    %s43 = sphi 0, %s43
    %s45 = sphi 0, %s43
    %s46 = sphi 0, %s45
    %s60 = sphi 0, %s46
    %s64 = sphi 0, %s64
    %s66 = sphi 0, %s64
    %s67 = sphi 0, %s66
    %s81 = sphi 0, %s67
    %s87 = sphi 0, %s89
    %s90 = sphi 0, %s87
    %s91 = sphi 0, %s90
    %s107 = sphi 0, %s91
  $region4: #{tpu_custom_call.1} parent=0 // loop_header_branch
    %12 = sbr.rel (%p10) target = $region8
  $region5: #{tpu_custom_call.1} parent=0 // loop_body
    %s14 = ssub.s32 %s9, 1
    %s15 = ssub.s32 %s9, 2
    %s16 = sadd.s32 %s9, 1
    %s17 = ssub.s32 %s9, %s16
    %p18 = scmp.eq.s32.totalorder %s17, 0
    %s20 = sadd.s32 %s19, 1
    %s21 = scalar_select %p18, %s19, %s20
    %p24 = pneg %p18
    %p25 = scmp.eq.s32.totalorder %s9, 1
    %p26 = por %p24, %p25
    %p27 = scmp.ne.s32.totalorder %s19, %s22
    %p28 = scmp.eq.s32.totalorder %s9, 0
    %p29 = por %p27, %p28
    %p30 = scmp.ne.s32.totalorder %s19, %s22
    %p31 = scmp.eq.s32.totalorder %s14, 1
    %p32 = por %p30, %p31
    %p33 = scmp.ne.s32.totalorder %s22, %s23
    %p34 = scmp.eq.s32.totalorder %s14, 0
    %p35 = por %p33, %p34
    %p36 = scmp.ne.s32.totalorder %s22, %s23
    %p37 = scmp.eq.s32.totalorder %s15, 1
    %p38 = por %p36, %p37
    %p40 = scmp.ne.s32.totalorder %s23, %s39
    %p41 = scmp.eq.s32.totalorder %s15, 0
    %p42 = por %p40, %p41
    %s44 = sadd.s32 %s43, 1
    %p47 = scmp.eq.s32.totalorder %s9, 1
    %p48 = scmp.ne.s32.totalorder %s43, %s45
    %p49 = scmp.eq.s32.totalorder %s9, 0
    %p50 = por %p48, %p49
    %p51 = scmp.ne.s32.totalorder %s43, %s45
    %p52 = scmp.eq.s32.totalorder %s14, 1
    %p53 = por %p51, %p52
    %p54 = scmp.ne.s32.totalorder %s45, %s46
    %p55 = scmp.eq.s32.totalorder %s14, 0
    %p56 = por %p54, %p55
    %p57 = scmp.ne.s32.totalorder %s45, %s46
    %p58 = scmp.eq.s32.totalorder %s15, 1
    %p59 = por %p57, %p58
    %p61 = scmp.ne.s32.totalorder %s46, %s60
    %p62 = scmp.eq.s32.totalorder %s15, 0
    %p63 = por %p61, %p62
    %s65 = sadd.s32 %s64, 1
    %p68 = scmp.eq.s32.totalorder %s9, 1
    %p69 = scmp.ne.s32.totalorder %s64, %s66
    %p70 = scmp.eq.s32.totalorder %s9, 0
    %p71 = por %p69, %p70
    %p72 = scmp.ne.s32.totalorder %s64, %s66
    %p73 = scmp.eq.s32.totalorder %s14, 1
    %p74 = por %p72, %p73
    %p75 = scmp.ne.s32.totalorder %s66, %s67
    %p76 = scmp.eq.s32.totalorder %s14, 0
    %p77 = por %p75, %p76
    %p78 = scmp.ne.s32.totalorder %s66, %s67
    %p79 = scmp.eq.s32.totalorder %s15, 1
    %p80 = por %p78, %p79
    %p82 = scmp.ne.s32.totalorder %s67, %s81
    %p83 = scmp.eq.s32.totalorder %s15, 0
    %p84 = por %p82, %p83
    %s85 = ssub.s32 %s9, %s16
    %p86 = scmp.eq.s32.totalorder %s85, 0
    %s88 = sadd.s32 %s87, 1
    %s89 = scalar_select %p86, %s87, %s88
    %p92 = pneg %p86
    %p93 = scmp.eq.s32.totalorder %s9, 1
    %p94 = por %p92, %p93
    %p95 = scmp.ne.s32.totalorder %s87, %s90
    %p96 = scmp.eq.s32.totalorder %s9, 0
    %p97 = por %p95, %p96
    %p98 = scmp.ne.s32.totalorder %s87, %s90
    %p99 = scmp.eq.s32.totalorder %s14, 1
    %p100 = por %p98, %p99
    %p101 = scmp.ne.s32.totalorder %s90, %s91
    %p102 = scmp.eq.s32.totalorder %s14, 0
    %p103 = por %p101, %p102
    %p104 = scmp.ne.s32.totalorder %s90, %s91
    %p105 = scmp.eq.s32.totalorder %s15, 1
    %p106 = por %p104, %p105
    %p108 = scmp.ne.s32.totalorder %s91, %s107
    %p109 = scmp.eq.s32.totalorder %s15, 0
    %p110 = por %p108, %p109
    %p111 = scmp.le.s32.totalorder 1, %s9
    %p112 = scmp.lt.s32.totalorder %s9, 3
    %p113 = pnand %p111, %p112
    %p114 = pneg %p113
    // Predicated region
    $region9: #{tpu_custom_call.1} parent=5 // pred_check
      _
    $region10: #{tpu_custom_call.1} parent=5 // pred_check_branch
      %116 = sbr.rel (%p113) target = $region12
    $region11: #{tpu_custom_call.1} parent=5 // pred_region
      %s117 = ssub.s32 %s9, 1
      // Predicated region
      $region13: #{tpu_custom_call.1} parent=11 // pred_check
        %p118 = pneg %p56
      $region14: #{tpu_custom_call.1} parent=11 // pred_check_branch
        %120 = sbr.rel (%p118) target = $region16
      $region15: #{tpu_custom_call.1} parent=11 // pred_region
        _
      $region16: #{tpu_custom_call.1} parent=11 // pred_fallthru
        _
      // Predicated region
      $region17: #{tpu_custom_call.1} parent=11 // pred_check
        %p121 = pneg %p77
      $region18: #{tpu_custom_call.1} parent=11 // pred_check_branch
        %123 = sbr.rel (%p121) target = $region20
      $region19: #{tpu_custom_call.1} parent=11 // pred_region
        _
      $region20: #{tpu_custom_call.1} parent=11 // pred_fallthru
        _
    $region12: #{tpu_custom_call.1} parent=5 // pred_fallthru
      _
    %p124 = scmp.lt.s32.totalorder %s9, 2
    // Predicated region
    $region21: #{tpu_custom_call.1} parent=5 // pred_check
      %p125 = pneg %p124
    $region22: #{tpu_custom_call.1} parent=5 // pred_check_branch
      %127 = sbr.rel (%p125) target = $region24
    $region23: #{tpu_custom_call.1} parent=5 // pred_region
      // Predicated region
      $region25: #{tpu_custom_call.1} parent=23 // pred_check
        %p128 = pneg %p29
      $region26: #{tpu_custom_call.1} parent=23 // pred_check_branch
        %130 = sbr.rel (%p128) target = $region28
      $region27: #{tpu_custom_call.1} parent=23 // pred_region
        %s131 = smul.u32 5, %s9
        %p132 = scmp.lt.s32.totalorder %s131, 9
        %s133 = scalar_select %p132, %s131, 9
        %s134 = smul.addr %s133, 8
        %s135 = scalar_lea.vmem %s0, %s134
        %s136 = smul.u32 5, %s9
      $region28: #{tpu_custom_call.1} parent=23 // pred_fallthru
        _
    $region24: #{tpu_custom_call.1} parent=5 // pred_fallthru
      _
    %p137 = scmp.le.s32.totalorder 1, %s9
    %p138 = scmp.lt.s32.totalorder %s9, 3
    %p139 = pnand %p137, %p138
    %p140 = pneg %p139
    // Predicated region
    $region29: #{tpu_custom_call.1} parent=5 // pred_check
      _
    $region30: #{tpu_custom_call.1} parent=5 // pred_check_branch
      %142 = sbr.rel (%p139) target = $region32
    $region31: #{tpu_custom_call.1} parent=5 // pred_region
      %s143 = ssub.s32 %s9, 1
      %s144 = smul.u32 5, %s14
      %p145 = scmp.lt.s32.totalorder %s144, 9
      %s146 = scalar_select %p145, %s144, 9
      %s147 = smul.addr %s146, 8
      %s148 = scalar_lea.vmem %s0, %s147
      %p149 = pneg %p35
      %p150 = pneg %p32
      %p151 = pneg %p56
      %p152 = pneg %p53
      %p153 = pneg %p77
      %p154 = pneg %p74
      %p155 = pneg %p103
      %p156 = pneg %p100
      %s157 = smul.u32 5, %s14
      %p158 = scmp.lt.s32.totalorder %s157, 9
      %s159 = scalar_select %p158, %s157, 9
      %s160 = smul.addr %s159, 8
      %s161 = scalar_lea.vmem %s3, %s160
      %s162 = smul.u32 5, %s14
      %p163 = scmp.lt.s32.totalorder %s162, 9
      %s164 = scalar_select %p163, %s162, 9
      %s165 = smul.addr %s164, 8
      %s166 = scalar_lea.vmem %s0, %s165
      %s167 = smul.u32 5, %s14
      %s168 = smul.u32 5, %s14
      %p169 = scmp.lt.s32.totalorder %s168, 9
      %s170 = scalar_select %p169, %s168, 9
      %s171 = smul.addr %s170, 8
      %s172 = scalar_lea.vmem %s3, %s171
      %s173 = smul.u32 5, %s14
      %v175 = vld [vmem:[%s166] sm:$0xff]
      %v176 = vld [vmem:[%s166 + $0x8] sm:$0xff]
      %v177 = vld [vmem:[%s166 + $0x10] sm:$0xff]
      %v178 = vld [vmem:[%s166 + $0x18] sm:$0xff]
      %v179 = vld [vmem:[%s166 + $0x20] sm:$0xff]
      %vm180 = vcmask 261120
      %181 = vst.msk [vmem:[#allocation2] sm:$0xff] %vm180, %v175
      %182 = vst.msk [vmem:[#allocation2 + $0x8] sm:$0xff] %vm180, %v176
      %183 = vst.msk [vmem:[#allocation2 + $0x10] sm:$0xff] %vm180, %v177
      %184 = vst.msk [vmem:[#allocation2 + $0x18] sm:$0xff] %vm180, %v178
      %185 = vst.msk [vmem:[#allocation2 + $0x20] sm:$0xff] %vm180, %v179
      %186 = vst.msk [vmem:[#allocation2 + $0x28] sm:$0xff] %vm180, 0.0
      %v187 = vld [vmem:[#allocation2] sm:$0xff]
      %v188 = vld [vmem:[#allocation2 + $0x8] sm:$0xff]
      %v189 = vld [vmem:[#allocation2 + $0x10] sm:$0xff]
      %v190 = vld [vmem:[#allocation2 + $0x18] sm:$0xff]
      %v191 = vld [vmem:[#allocation2 + $0x20] sm:$0xff]
      %v192 = vpack.c.bf16 %v188, %v187
      %v193 = vpack.c.bf16 %v190, %v189
      %v194 = vpack.c.bf16 %v191, %v191
      %v195 = vld [vmem:[%s1] sm:$0xff]
      %v196 = vld [vmem:[%s1 + $0x8] sm:$0xff]
      %v197 = vld [vmem:[%s1 + $0x10] sm:$0xff]
      %v198 = vld [vmem:[%s1 + $0x18] sm:$0xff]
      %v199 = vld [vmem:[#allocation2 + $0x1] sm:$0xff]
      %v200 = vld [vmem:[#allocation2 + $0x9] sm:$0xff]
      %v201 = vld [vmem:[#allocation2 + $0x11] sm:$0xff]
      %v202 = vld [vmem:[#allocation2 + $0x19] sm:$0xff]
      %v203 = vld [vmem:[#allocation2 + $0x21] sm:$0xff]
      %v204 = vpack.c.bf16 %v200, %v199
      %v205 = vpack.c.bf16 %v202, %v201
      %v206 = vpack.c.bf16 %v203, %v203
      %v207 = vld [vmem:[%s1 + $0x20] sm:$0xff]
      %v208 = vld [vmem:[%s1 + $0x28] sm:$0xff]
      %v209 = vld [vmem:[%s1 + $0x30] sm:$0xff]
      %v210 = vld [vmem:[%s1 + $0x38] sm:$0xff]
      %v215 = vunpack.c.l.b16 %v207
      %v216 = vunpack.c.h.b16 %v207
      %v217 = vunpack.c.l.b16 %v208
      %v218 = vunpack.c.h.b16 %v208
      %v219 = vunpack.c.l.b16 %v209
      %v220 = vunpack.c.h.b16 %v209
      %v221 = vunpack.c.l.b16 %v210
      %v222 = vunpack.c.h.b16 %v210
      %v223 = vpack.c.b16 %v217, %v215
      %v224 = vpack.c.b16 %v218, %v216
      %v225 = vpack.c.b16 %v221, %v219
      %v226 = vpack.c.b16 %v222, %v220
      %v232 = vsel %vm180, %v204, 0
      %v235 = vsel %vm180, %v205, 0
      %v238 = vsel %vm180, %v206, 0
      %240 = vmatpush.bf16.msra.mxu0 0
      %241 = vmatpush.bf16.msra.mxu0 0
      %242 = vmatpush.bf16.msra.mxu0 0
      %243 = vmatpush.bf16.msra.mxu0 0
      %244 = vmatpush.bf16.msra.mxu0 0
      %245 = vmatpush.bf16.msra.mxu0 0
      %246 = vmatpush.bf16.msra.mxu0 %v225
      %247 = vmatpush.bf16.msra.mxu0 %v223
      %248 = vmatmul.bf16.gmra.mxu0 %v232
      %v249 = vpop.f32.mrf.mxu0
      %v250 = vadd.f32 0.0, %v249
      %v251 = vpop.f32.mrf.mxu0
      %v252 = vadd.f32 0.0, %v251
      %253 = vmatmul.bf16.gmra.mxu0 %v235
      %v254 = vpop.f32.mrf.mxu0
      %v255 = vadd.f32 0.0, %v254
      %v256 = vpop.f32.mrf.mxu0
      %v257 = vadd.f32 0.0, %v256
      %258 = vmatmul.bf16.gmra.mxu0 %v238
      %v259 = vpop.f32.mrf.mxu0
      %v260 = vadd.f32 0.0, %v259
      %v261 = vpop.f32.mrf.mxu0
      %262 = vdwg.mxu0
      %263 = vmatpush.bf16.msra.mxu0 0
      %264 = vmatpush.bf16.msra.mxu0 0
      %265 = vmatpush.bf16.msra.mxu0 0
      %266 = vmatpush.bf16.msra.mxu0 0
      %267 = vmatpush.bf16.msra.mxu0 0
      %268 = vmatpush.bf16.msra.mxu0 0
      %269 = vmatpush.bf16.msra.mxu0 %v226
      %270 = vmatpush.bf16.msra.mxu0 %v224
      %271 = vmatmul.bf16.gmra.mxu0 %v232
      %v272 = vpop.f32.mrf.mxu0
      %v273 = vadd.f32 0.0, %v272
      %v274 = vpop.f32.mrf.mxu0
      %v275 = vadd.f32 0.0, %v274
      %276 = vmatmul.bf16.gmra.mxu0 %v235
      %v277 = vpop.f32.mrf.mxu0
      %v278 = vadd.f32 0.0, %v277
      %v279 = vpop.f32.mrf.mxu0
      %v280 = vadd.f32 0.0, %v279
      %281 = vmatmul.bf16.gmra.mxu0 %v238
      %v282 = vpop.f32.mrf.mxu0
      %v283 = vadd.f32 0.0, %v282
      %v284 = vpop.f32.mrf.mxu0
      %285 = vdwg.mxu0
      %v290 = vunpack.c.l.b16 %v195
      %v291 = vunpack.c.h.b16 %v195
      %v292 = vunpack.c.l.b16 %v196
      %v293 = vunpack.c.h.b16 %v196
      %v294 = vunpack.c.l.b16 %v197
      %v295 = vunpack.c.h.b16 %v197
      %v296 = vunpack.c.l.b16 %v198
      %v297 = vunpack.c.h.b16 %v198
      %v298 = vpack.c.b16 %v292, %v290
      %v299 = vpack.c.b16 %v293, %v291
      %v300 = vpack.c.b16 %v296, %v294
      %v301 = vpack.c.b16 %v297, %v295
      %v307 = vsel %vm180, %v192, 0
      %v310 = vsel %vm180, %v193, 0
      %v313 = vsel %vm180, %v194, 0
      %315 = vmatpush.bf16.msra.mxu0 0
      %316 = vmatpush.bf16.msra.mxu0 0
      %317 = vmatpush.bf16.msra.mxu0 0
      %318 = vmatpush.bf16.msra.mxu0 0
      %319 = vmatpush.bf16.msra.mxu0 0
      %320 = vmatpush.bf16.msra.mxu0 0
      %321 = vmatpush.bf16.msra.mxu0 %v300
      %322 = vmatpush.bf16.msra.mxu0 %v298
      %323 = vmatmul.bf16.gmra.mxu0 %v307
      %v324 = vpop.f32.mrf.mxu0
      %v325 = vadd.f32 %v250, %v324
      %v326 = vpop.f32.mrf.mxu0
      %v327 = vadd.f32 %v252, %v326
      %328 = vmatmul.bf16.gmra.mxu0 %v310
      %v329 = vpop.f32.mrf.mxu0
      %v330 = vadd.f32 %v255, %v329
      %v331 = vpop.f32.mrf.mxu0
      %v332 = vadd.f32 %v257, %v331
      %333 = vmatmul.bf16.gmra.mxu0 %v313
      %v334 = vpop.f32.mrf.mxu0
      %v335 = vadd.f32 %v260, %v334
      %v336 = vpop.f32.mrf.mxu0
      %337 = vdwg.mxu0
      %338 = vmatpush.bf16.msra.mxu0 0
      %339 = vmatpush.bf16.msra.mxu0 0
      %340 = vmatpush.bf16.msra.mxu0 0
      %341 = vmatpush.bf16.msra.mxu0 0
      %342 = vmatpush.bf16.msra.mxu0 0
      %343 = vmatpush.bf16.msra.mxu0 0
      %344 = vmatpush.bf16.msra.mxu0 %v301
      %345 = vmatpush.bf16.msra.mxu0 %v299
      %346 = vmatmul.bf16.gmra.mxu0 %v307
      %v347 = vpop.f32.mrf.mxu0
      %v348 = vadd.f32 %v273, %v347
      %v349 = vpop.f32.mrf.mxu0
      %v350 = vadd.f32 %v275, %v349
      %351 = vmatmul.bf16.gmra.mxu0 %v310
      %v352 = vpop.f32.mrf.mxu0
      %v353 = vadd.f32 %v278, %v352
      %v354 = vpop.f32.mrf.mxu0
      %v355 = vadd.f32 %v280, %v354
      %356 = vmatmul.bf16.gmra.mxu0 %v313
      %v357 = vpop.f32.mrf.mxu0
      %v358 = vadd.f32 %v283, %v357
      %v359 = vpop.f32.mrf.mxu0
      %360 = vdwg.mxu0
      %v361 = vmul.f32 %v325, %v325
      %v362 = vmul.f32 %v327, %v327
      %v363 = vmul.f32 %v330, %v330
      %v364 = vmul.f32 %v332, %v332
      %v365 = vmul.f32 %v335, %v335
      %v366 = vmul.f32 %v348, %v348
      %v367 = vmul.f32 %v350, %v350
      %v368 = vmul.f32 %v353, %v353
      %v369 = vmul.f32 %v355, %v355
      %v370 = vmul.f32 %v358, %v358
      %v371 = vadd.f32 %v361, %v366
      %v372 = vadd.f32 %v362, %v367
      %v373 = vadd.f32 %v363, %v368
      %v374 = vadd.f32 %v364, %v369
      %v375 = vadd.f32 %v365, %v370
      %v376 = vrsqrt.pop %v371
      %v377 = vmul.f32 %v376, %v371
      %v378 = vmul.f32 %v377, %v376
      %v379 = vmul.f32 0.5, %v378
      %v380 = vsub.f32 1.5, %v379
      %v381 = vmul.f32 %v376, %v380
      %v382 = vmul.f32 %v371, %v381
      %vm383 = vcmp.eq.f32.partialorder %v371, inf
      %v384 = vsel %vm383, %v371, %v382
      %vm385 = vcmp.eq.f32.partialorder %v371, 0.0
      %v386 = vand.u32 %v371, 2147483648
      %v387 = vsel %vm385, %v386, %v384
      %v388 = vrsqrt.pop %v372
      %v389 = vmul.f32 %v388, %v372
      %v390 = vmul.f32 %v389, %v388
      %v391 = vmul.f32 0.5, %v390
      %v392 = vsub.f32 1.5, %v391
      %v393 = vmul.f32 %v388, %v392
      %v394 = vmul.f32 %v372, %v393
      %vm395 = vcmp.eq.f32.partialorder %v372, inf
      %v396 = vsel %vm395, %v372, %v394
      %vm397 = vcmp.eq.f32.partialorder %v372, 0.0
      %v398 = vand.u32 %v372, 2147483648
      %v399 = vsel %vm397, %v398, %v396
      %v400 = vrsqrt.pop %v373
      %v401 = vmul.f32 %v400, %v373
      %v402 = vmul.f32 %v401, %v400
      %v403 = vmul.f32 0.5, %v402
      %v404 = vsub.f32 1.5, %v403
      %v405 = vmul.f32 %v400, %v404
      %v406 = vmul.f32 %v373, %v405
      %vm407 = vcmp.eq.f32.partialorder %v373, inf
      %v408 = vsel %vm407, %v373, %v406
      %vm409 = vcmp.eq.f32.partialorder %v373, 0.0
      %v410 = vand.u32 %v373, 2147483648
      %v411 = vsel %vm409, %v410, %v408
      %v412 = vrsqrt.pop %v374
      %v413 = vmul.f32 %v412, %v374
      %v414 = vmul.f32 %v413, %v412
      %v415 = vmul.f32 0.5, %v414
      %v416 = vsub.f32 1.5, %v415
      %v417 = vmul.f32 %v412, %v416
      %v418 = vmul.f32 %v374, %v417
      %vm419 = vcmp.eq.f32.partialorder %v374, inf
      %v420 = vsel %vm419, %v374, %v418
      %vm421 = vcmp.eq.f32.partialorder %v374, 0.0
      %v422 = vand.u32 %v374, 2147483648
      %v423 = vsel %vm421, %v422, %v420
      %v424 = vrsqrt.pop %v375
      %v425 = vmul.f32 %v424, %v375
      %v426 = vmul.f32 %v425, %v424
      %v427 = vmul.f32 0.5, %v426
      %v428 = vsub.f32 1.5, %v427
      %v429 = vmul.f32 %v424, %v428
      %v430 = vmul.f32 %v375, %v429
      %vm431 = vcmp.eq.f32.partialorder %v375, inf
      %v432 = vsel %vm431, %v375, %v430
      %vm433 = vcmp.eq.f32.partialorder %v375, 0.0
      %v434 = vand.u32 %v375, 2147483648
      %v435 = vsel %vm433, %v434, %v432
      %v436 = vld [vmem:[%s2] sm:$0xff]
      %v437 = vld [vmem:[%s2 + $0x8] sm:$0xff]
      %v438 = vld [vmem:[%s2 + $0x10] sm:$0xff]
      %v439 = vld [vmem:[%s2 + $0x18] sm:$0xff]
      %v440 = vld [vmem:[%s2 + $0x20] sm:$0xff]
      %v441 = vld [vmem:[%s2 + $0x28] sm:$0xff]
      %v442 = vld [vmem:[%s2 + $0x30] sm:$0xff]
      %v443 = vld [vmem:[%s2 + $0x38] sm:$0xff]
      %v444 = vld [vmem:[%s2 + $0x40] sm:$0xff]
      %v445 = vld [vmem:[%s2 + $0x48] sm:$0xff]
      %v446 = vld [vmem:[%s2 + $0x50] sm:$0xff]
      %v447 = vld [vmem:[%s2 + $0x58] sm:$0xff]
      %v448 = vld [vmem:[%s2 + $0x60] sm:$0xff]
      %v449 = vld [vmem:[%s2 + $0x68] sm:$0xff]
      %v450 = vld [vmem:[%s2 + $0x70] sm:$0xff]
      %v451 = vld [vmem:[%s2 + $0x78] sm:$0xff]
      %452 = vmatpush.msra.mxu0 %v451
      %453 = vmatpush.msra.mxu0 %v450
      %454 = vmatpush.msra.mxu0 %v449
      %455 = vmatpush.msra.mxu0 %v448
      %456 = vmatpush.msra.mxu0 %v447
      %457 = vmatpush.msra.mxu0 %v446
      %458 = vmatpush.msra.mxu0 %v445
      %459 = vmatpush.msra.mxu0 %v444
      %460 = vmatpush.msra.mxu0 %v443
      %461 = vmatpush.msra.mxu0 %v442
      %462 = vmatpush.msra.mxu0 %v441
      %463 = vmatpush.msra.mxu0 %v440
      %464 = vmatpush.msra.mxu0 %v439
      %465 = vmatpush.msra.mxu0 %v438
      %466 = vmatpush.msra.mxu0 %v437
      %467 = vmatpush.msra.mxu0 %v436
      %468 = vmatmul.f32.gmra.mxu0 %v387
      %v469 = vpop.f32.mrf.mxu0
      %v470 = vadd.f32 0.0, %v469
      %471 = vmatmul.f32.gmra.mxu0 %v399
      %v472 = vpop.f32.mrf.mxu0
      %v473 = vadd.f32 0.0, %v472
      %474 = vmatmul.f32.gmra.mxu0 %v411
      %v475 = vpop.f32.mrf.mxu0
      %v476 = vadd.f32 0.0, %v475
      %477 = vmatmul.f32.gmra.mxu0 %v423
      %v478 = vpop.f32.mrf.mxu0
      %v479 = vadd.f32 0.0, %v478
      %480 = vmatmul.f32.gmra.mxu0 %v435
      %v481 = vpop.f32.mrf.mxu0
      %v482 = vadd.f32 0.0, %v481
      %483 = vdwg.mxu0
      %vm484 = vcmask 64512
      %485 = vst.msk [vmem:[%s172] sm:$0xff] %vm484, %v470
      %486 = vst.msk [vmem:[%s172 + $0x8] sm:$0xff] %vm484, %v473
      %487 = vst.msk [vmem:[%s172 + $0x10] sm:$0xff] %vm484, %v476
      %488 = vst.msk [vmem:[%s172 + $0x18] sm:$0xff] %vm484, %v479
      %489 = vst.msk [vmem:[%s172 + $0x20] sm:$0xff] %vm484, %v482
      %s490 = smul.u32 5, %s14
      %p491 = scmp.lt.s32.totalorder %s490, 9
      %s492 = scalar_select %p491, %s490, 9
      %s493 = smul.addr %s492, 8
      %s494 = scalar_lea.vmem %s3, %s493
      // Predicated region
      $region33: #{tpu_custom_call.1} parent=31 // pred_check
        %p495 = pneg %p100
      $region34: #{tpu_custom_call.1} parent=31 // pred_check_branch
        %497 = sbr.rel (%p495) target = $region36
      $region35: #{tpu_custom_call.1} parent=31 // pred_region
        %s498 = smul.u32 5, %s14
      $region36: #{tpu_custom_call.1} parent=31 // pred_fallthru
        _
    $region32: #{tpu_custom_call.1} parent=5 // pred_fallthru
      _
    %p499 = scmp.le.s32.totalorder 2, %s9
    // Predicated region
    $region37: #{tpu_custom_call.1} parent=5 // pred_check
      %p500 = pneg %p499
    $region38: #{tpu_custom_call.1} parent=5 // pred_check_branch
      %502 = sbr.rel (%p500) target = $region40
    $region39: #{tpu_custom_call.1} parent=5 // pred_region
      %s503 = ssub.s32 %s9, 2
      // Predicated region
      $region41: #{tpu_custom_call.1} parent=39 // pred_check
        %p504 = pneg %p106
      $region42: #{tpu_custom_call.1} parent=39 // pred_check_branch
        %506 = sbr.rel (%p504) target = $region44
      $region43: #{tpu_custom_call.1} parent=39 // pred_region
        %s507 = smul.u32 5, %s15
        %p508 = scmp.lt.s32.totalorder %s507, 9
        %s509 = scalar_select %p508, %s507, 9
        %s510 = smul.addr %s509, 8
        %s511 = scalar_lea.vmem %s3, %s510
      $region44: #{tpu_custom_call.1} parent=39 // pred_fallthru
        _
    $region40: #{tpu_custom_call.1} parent=5 // pred_fallthru
      _
  $region6: #{tpu_custom_call.1} parent=0 // loop_footer
    %s13 = sadd.s32 1, %s9
  $region7: #{tpu_custom_call.1} parent=0 // loop_footer_branch
    %8 = sbr.rel target = $region3
  $region8: #{tpu_custom_call.1} parent=0 // loop_exit
    _

</llo_original>
